<compile_context>
chip_gen: v5e
topology: v5e:2x2
jax: 0.10.0
libtpu: 0.0.40
codegen_flags: <defaults>
</compile_context>

<pallas_src>
import functools

import jax
import jax.numpy as jnp
from jax.experimental import pallas as pl
from jax.experimental.pallas import tpu as pltpu

_H1 = 128   # fc1 hidden, padded 64 -> 128 lanes
_HB = 512   # fused branch hidden: [value-256 | adv-256]


def _round_up(x, m):
    return ((x + m - 1) // m) * m


def _qnetwork_kernel(x_ref, w1_ref, wb_ref, wh_ref, bias_ref, bbr_ref, q_ref,
                     *, out_cols):
    wdt = w1_ref.dtype        # matmul operand dtype (f32 or bf16)
    edt = bbr_ref.dtype       # elementwise dtype of the wide (TB, 512) stage
    npad = wh_ref.shape[1]

    x = x_ref[...]

    # fc1 + relu: (TB, in) @ (in, 128); hidden padded -> lane-dense epilogue.
    y = jnp.dot(x.astype(wdt), w1_ref[...], preferred_element_type=jnp.float32)
    y = jnp.maximum(y + bias_ref[:, 0:_H1], 0.0)

    # fused fc_value | fc_adv + relu: (TB, 128) @ (128, 512).
    # Widest elementwise stage -> done in `edt` (bf16 on v6e/v7x, f32 on v5e).
    h = jnp.dot(y.astype(wdt), wb_ref[...], preferred_element_type=jnp.float32)
    h = jnp.maximum(h.astype(edt) + bbr_ref[...], 0)

    # Dueling head, folded at pack time: out[:, j] = value + adv_j - mean(adv).
    out = jnp.dot(h.astype(wdt), wh_ref[...], preferred_element_type=jnp.float32)
    out = out + bias_ref[:, _H1:_H1 + npad]

    q_ref[...] = out[:, :out_cols].astype(q_ref.dtype)


def _pick_block_b(B, max_tb=2048):
    """Batch tile: >= 2 grid steps when possible (pipelining, v7x dual-TC),
    otherwise as large as possible (per-grid-step overhead dominates)."""
    if B <= 8:
        return 8
    tb = _round_up((B + 1) // 2, 8)       # grid length of (at least) 2
    return max(8, min(tb, max_tb))


def qnetwork_forward(state, packed, *, block_b=None):
    """Dueling-Q forward: state (B, input_dim) -> Q (B, n_action)."""
    B, input_dim = state.shape
    n_action = packed["n_action"]
    npad = packed["w_head"].shape[1]

    if block_b is None:
        TB = _pick_block_b(B)
    else:
        TB = max(8, min(_round_up(block_b, 8), _round_up(B, 8)))

    wbytes = jnp.dtype(packed["w1"].dtype).itemsize
    in_bytes = jnp.dtype(state.dtype).itemsize

    def vmem_est(tb):
        act = 2 * tb * input_dim * in_bytes                              # 2-buf in
        out = 2 * tb * npad * 4                                          # 2-buf out
        wts = 2 * (input_dim * _H1 + _H1 * _HB + _HB * npad) * wbytes    # weights
        bias = 2 * ((_H1 + npad) * 4 + _HB * 4)
        tmp = tb * (_H1 + _HB + npad) * 4                                # live vals
        return act + out + wts + bias + tmp

    # VMEM safeguard (v7x has only 64 MiB physical VMEM per TensorCore).
    while TB > 8 and vmem_est(TB) > 48 * 1024 * 1024:
        TB = max(8, _round_up(TB // 2, 8))
    grid = (pl.cdiv(B, TB),)

    # Lane-dense HBM output only when the extra writeback is negligible
    # versus the per-row activation read; otherwise keep the narrow store.
    pad_out = input_dim * in_bytes >= npad * 4
    out_cols_hbm = npad if pad_out else n_action
    kernel = functools.partial(_qnetwork_kernel, out_cols=out_cols_hbm)

    cp = dict(dimension_semantics=("parallel",))
    est = vmem_est(TB)
    if est > 32 * 1024 * 1024:
        cp["vmem_limit_bytes"] = int(min(est * 5 // 4, 64 * 1024 * 1024))

    q = pl.pallas_call(
        kernel,
        out_shape=jax.ShapeDtypeStruct((B, out_cols_hbm), jnp.float32),
        grid_spec=pltpu.PrefetchScalarGridSpec(
            num_scalar_prefetch=0,
            grid=grid,
            in_specs=[
                # activations: pipelined over the batch grid
                pl.BlockSpec((TB, input_dim), lambda i: (i, 0)),
                # weights / biases: constant index_map -> VMEM-resident
                pl.BlockSpec(packed["w1"].shape, lambda i: (0, 0)),
                pl.BlockSpec(packed["w_branch"].shape, lambda i: (0, 0)),
                pl.BlockSpec(packed["w_head"].shape, lambda i: (0, 0)),
                pl.BlockSpec(packed["bias"].shape, lambda i: (0, 0)),
                pl.BlockSpec(packed["bias_branch"].shape, lambda i: (0, 0)),
            ],
            out_specs=pl.BlockSpec((TB, out_cols_hbm), lambda i: (i, 0)),
        ),
        compiler_params=pltpu.CompilerParams(**cp),
    )(state, packed["w1"], packed["w_branch"], packed["w_head"],
      packed["bias"], packed["bias_branch"])

    return q[:, :n_action] if pad_out else q


def pack_params(p, weight_dtype=jnp.float32, epilogue_dtype=None):
    """Fold the dueling head into the weights and pad everything lane-dense.

    epilogue_dtype: dtype for the widest elementwise stage (branch bias+ReLU).
      Defaults to weight_dtype (use bf16 on v6e/v7x); pass jnp.float32 on v5e.
    All folding/padding math is done in f32 before any cast.
    """
    if epilogue_dtype is None:
        epilogue_dtype = weight_dtype
    f32 = jnp.float32
    n_action = int(p["wadv"].shape[1])
    input_dim = int(p["w1"].shape[0])
    npad = _round_up(max(n_action, 1), 128)

    # fc1, hidden padded 64 -> 128 with zero columns / zero bias.
    w1 = jnp.zeros((input_dim, _H1), f32).at[:, :64].set(p["w1"].astype(f32))
    b1 = jnp.zeros((1, _H1), f32).at[:, :64].set(p["b1"].astype(f32))

    # Fused value|adv branch: (128, 512); zero rows for the padded fc1 lanes.
    wb = jnp.zeros((_H1, _HB), f32)
    wb = wb.at[:64, :256].set(p["wv"].astype(f32))
    wb = wb.at[:64, 256:].set(p["wa"].astype(f32))
    bb = jnp.concatenate([p["bv"], p["ba"]], axis=1).astype(f32)      # (1, 512)

    # Dueling fold (exact identity, computed in f32):
    #   Q = value + adv - mean(adv)
    wval = p["wval"].astype(f32)                                      # (256, 1)
    wadv = p["wadv"].astype(f32)                                      # (256, n)
    wq = jnp.concatenate(
        [jnp.broadcast_to(wval, (256, n_action)),
         wadv - jnp.mean(wadv, axis=1, keepdims=True)], axis=0)       # (512, n)
    wq = jnp.zeros((_HB, npad), f32).at[:, :n_action].set(wq)

    bq = (p["bval"].astype(f32) + p["badv"].astype(f32)
          - jnp.mean(p["badv"].astype(f32), axis=1, keepdims=True))   # (1, n)
    bq = jnp.zeros((1, npad), f32).at[:, :n_action].set(bq)

    bias = jnp.concatenate([b1, bq], axis=1)                          # (1, 128+npad)

    return dict(
        w1=w1.astype(weight_dtype),
        w_branch=wb.astype(weight_dtype),
        w_head=wq.astype(weight_dtype),
        bias=bias,                                                    # f32
        bias_branch=bb.astype(epilogue_dtype),
        n_action=n_action,
    )


def init_params(key, input_dim, n_action):
    """Deterministic init mimicking nn.Linear's U(-1/sqrt(fan_in), 1/sqrt(fan_in))."""
    def linear(k, fan_in, fan_out):
        kw, kb = jax.random.split(k)
        bound = 1.0 / jnp.sqrt(jnp.float32(fan_in))
        w = jax.random.uniform(kw, (fan_in, fan_out), jnp.float32, -bound, bound)
        b = jax.random.uniform(kb, (1, fan_out), jnp.float32, -bound, bound)
        return w, b

    keys = jax.random.split(key, 5)
    w1, b1 = linear(keys[0], input_dim, 64)
    wv, bv = linear(keys[1], 64, 256)
    wa, ba = linear(keys[2], 64, 256)
    wval, bval = linear(keys[3], 256, 1)
    wadv, badv = linear(keys[4], 256, n_action)
    return dict(w1=w1, b1=b1, wv=wv, bv=bv, wa=wa, ba=ba,
                wval=wval, bval=bval, wadv=wadv, badv=badv)


def qnetwork_ref(state, p):
    """Pure-JAX reference of the PyTorch forward, for verification."""
    y = jnp.maximum(state @ p["w1"] + p["b1"], 0.0)
    v = jnp.maximum(y @ p["wv"] + p["bv"], 0.0) @ p["wval"] + p["bval"]
    a = jnp.maximum(y @ p["wa"] + p["ba"], 0.0) @ p["wadv"] + p["badv"]
    return v + a - jnp.mean(a, axis=1, keepdims=True)


# TODO(synk): select_action (argmax over Q + .item()) is host-side control; use
# jnp.argmax on the kernel output in the caller — not part of the kernel.

if __name__ == "__main__":
    B, input_dim, n_action = 8, 32, 8
    key = jax.random.PRNGKey(0)
    k_state, k_params = jax.random.split(key)
    state = jax.random.normal(k_state, (B, input_dim), jnp.float32)
    params = init_params(k_params, input_dim, n_action)
    q_ref = qnetwork_ref(state, params)

    # f32 weights + f32 elementwise: tight tolerance.
    packed32 = pack_params(params, jnp.float32)
    q32 = jax.block_until_ready(qnetwork_forward(state, packed32))
    assert q32.shape == (B, n_action)
    assert jnp.allclose(q32, q_ref, atol=1e-4, rtol=1e-4), \
        float(jnp.max(jnp.abs(q32 - q_ref)))

    # bf16 weights + bf16 wide elementwise (v6e/v7x path), f32 accumulation.
    packed16 = pack_params(params, jnp.bfloat16)
    q16 = jax.block_until_ready(qnetwork_forward(state, packed16))
    assert q16.shape == (B, n_action)
    assert jnp.allclose(q16, q_ref, atol=5e-2, rtol=5e-2)

    # Partial final batch tile (B % TB != 0) exercises Pallas block clipping.
    B2 = 13
    state2 = jax.random.normal(jax.random.PRNGKey(2), (B2, input_dim), jnp.float32)
    q_ref2 = qnetwork_ref(state2, params)
    q2 = jax.block_until_ready(qnetwork_forward(state2, packed32))
    assert q2.shape == (B2, n_action)
    assert jnp.allclose(q2, q_ref2, atol=1e-4, rtol=1e-4)

    print("KERNEL_OK")
</pallas_src>

<mosaic_0001>
module attributes {stable_mosaic.version = 11 : i64} {
  func.func @_qnetwork_kernel(%arg0: i32, %arg1: memref<8x32xf32, #tpu.memory_space<vmem>>, %arg2: memref<32x128xf32, #tpu.memory_space<vmem>>, %arg3: memref<128x512xf32, #tpu.memory_space<vmem>>, %arg4: memref<512x128xf32, #tpu.memory_space<vmem>>, %arg5: memref<1x256xf32, #tpu.memory_space<vmem>>, %arg6: memref<1x512xf32, #tpu.memory_space<vmem>>, %arg7: memref<8x8xf32, #tpu.memory_space<vmem>>) attributes {dimension_semantics = [#tpu.dimension_semantics<parallel>], iteration_bounds = array<i64: 1>, scalar_prefetch = 0 : i64, scratch_operands = 0 : i64, tpu.core_type = #tpu.core_type<tc>, window_params = [{transform_indices = @transform_0, window_bounds = array<i64: 8, 32>}, {pipeline_mode = #tpu.pipeline_mode<synchronous>, transform_indices = @transform_1, window_bounds = array<i64: 32, 128>}, {pipeline_mode = #tpu.pipeline_mode<synchronous>, transform_indices = @transform_2, window_bounds = array<i64: 128, 512>}, {pipeline_mode = #tpu.pipeline_mode<synchronous>, transform_indices = @transform_3, window_bounds = array<i64: 512, 128>}, {pipeline_mode = #tpu.pipeline_mode<synchronous>, transform_indices = @transform_4, window_bounds = array<i64: 1, 256>}, {pipeline_mode = #tpu.pipeline_mode<synchronous>, transform_indices = @transform_5, window_bounds = array<i64: 1, 512>}, {transform_indices = @transform_6, window_bounds = array<i64: 8, 8>}]} {
    %c0 = arith.constant 0 : index
    %c0_0 = arith.constant 0 : index
    %0 = vector.load %arg1[%c0, %c0_0] : memref<8x32xf32, #tpu.memory_space<vmem>>, vector<8x32xf32>
    %c0_1 = arith.constant 0 : index
    %c0_2 = arith.constant 0 : index
    %1 = vector.load %arg2[%c0_1, %c0_2] : memref<32x128xf32, #tpu.memory_space<vmem>>, vector<32x128xf32>
    %cst = arith.constant dense<0.000000e+00> : vector<8x128xf32>
    %2 = tpu.matmul %0, %1, %cst {dimension_numbers = #tpu.dot_dimension_numbers<[1], [0], [0], [1], [0, 0, 1, 1], [], []>} : vector<8x32xf32>, vector<32x128xf32>, vector<8x128xf32> -> vector<8x128xf32>
    %c0_3 = arith.constant 0 : index
    %c0_4 = arith.constant 0 : index
    %3 = vector.load %arg5[%c0_3, %c0_4] : memref<1x256xf32, #tpu.memory_space<vmem>>, vector<1x128xf32>
    %4 = vector.broadcast %3 : vector<1x128xf32> to vector<8x128xf32>
    %5 = arith.addf %2, %4 : vector<8x128xf32>
    %cst_5 = arith.constant 0.000000e+00 : f32
    %6 = vector.broadcast %cst_5 : f32 to vector<8x128xf32>
    %7 = arith.maximumf %5, %6 : vector<8x128xf32>
    %c0_6 = arith.constant 0 : index
    %c0_7 = arith.constant 0 : index
    %8 = vector.load %arg3[%c0_6, %c0_7] : memref<128x512xf32, #tpu.memory_space<vmem>>, vector<128x512xf32>
    %cst_8 = arith.constant dense<0.000000e+00> : vector<8x512xf32>
    %9 = tpu.matmul %7, %8, %cst_8 {dimension_numbers = #tpu.dot_dimension_numbers<[1], [0], [0], [1], [0, 0, 1, 1], [], []>} : vector<8x128xf32>, vector<128x512xf32>, vector<8x512xf32> -> vector<8x512xf32>
    %c0_9 = arith.constant 0 : index
    %c0_10 = arith.constant 0 : index
    %10 = vector.load %arg6[%c0_9, %c0_10] : memref<1x512xf32, #tpu.memory_space<vmem>>, vector<1x512xf32>
    %11 = vector.broadcast %10 : vector<1x512xf32> to vector<8x512xf32>
    %12 = arith.addf %9, %11 : vector<8x512xf32>
    %cst_11 = arith.constant 0.000000e+00 : f32
    %13 = vector.broadcast %cst_11 : f32 to vector<8x512xf32>
    %14 = arith.maximumf %12, %13 : vector<8x512xf32>
    %c0_12 = arith.constant 0 : index
    %c0_13 = arith.constant 0 : index
    %15 = vector.load %arg4[%c0_12, %c0_13] : memref<512x128xf32, #tpu.memory_space<vmem>>, vector<512x128xf32>
    %cst_14 = arith.constant dense<0.000000e+00> : vector<8x128xf32>
    %16 = tpu.matmul %14, %15, %cst_14 {dimension_numbers = #tpu.dot_dimension_numbers<[1], [0], [0], [1], [0, 0, 1, 1], [], []>} : vector<8x512xf32>, vector<512x128xf32>, vector<8x128xf32> -> vector<8x128xf32>
    %c0_15 = arith.constant 0 : index
    %c128 = arith.constant 128 : index
    %17 = vector.load %arg5[%c0_15, %c128] : memref<1x256xf32, #tpu.memory_space<vmem>>, vector<1x128xf32>
    %18 = vector.broadcast %17 : vector<1x128xf32> to vector<8x128xf32>
    %19 = arith.addf %16, %18 : vector<8x128xf32>
    %20 = vector.extract_strided_slice %19 {offsets = [0, 0], sizes = [8, 8], strides = [1, 1]} : vector<8x128xf32> to vector<8x8xf32>
    %c0_16 = arith.constant 0 : index
    %c0_17 = arith.constant 0 : index
    %21 = vector.load %arg7[%c0_16, %c0_17] : memref<8x8xf32, #tpu.memory_space<vmem>>, vector<8x8xf32>
    tpu.vector_store %arg7[%c0_16, %c0_17], %20 {strides = array<i32>} : memref<8x8xf32, #tpu.memory_space<vmem>>, vector<8x8xf32>,
    return
  }
  func.func @transform_0(%arg0: i32) -> (i32, i32) {
    %c0_i32 = arith.constant 0 : i32
    %c0_i32_0 = arith.constant 0 : i32
    return %arg0, %c0_i32 : i32, i32
  }
  func.func @transform_1(%arg0: i32) -> (i32, i32) {
    %c0_i32 = arith.constant 0 : i32
    %c0_i32_0 = arith.constant 0 : i32
    %c0_i32_1 = arith.constant 0 : i32
    return %c0_i32, %c0_i32_0 : i32, i32
  }
  func.func @transform_2(%arg0: i32) -> (i32, i32) {
    %c0_i32 = arith.constant 0 : i32
    %c0_i32_0 = arith.constant 0 : i32
    %c0_i32_1 = arith.constant 0 : i32
    return %c0_i32, %c0_i32_0 : i32, i32
  }
  func.func @transform_3(%arg0: i32) -> (i32, i32) {
    %c0_i32 = arith.constant 0 : i32
    %c0_i32_0 = arith.constant 0 : i32
    %c0_i32_1 = arith.constant 0 : i32
    return %c0_i32, %c0_i32_0 : i32, i32
  }
  func.func @transform_4(%arg0: i32) -> (i32, i32) {
    %c0_i32 = arith.constant 0 : i32
    %c0_i32_0 = arith.constant 0 : i32
    %c0_i32_1 = arith.constant 0 : i32
    return %c0_i32, %c0_i32_0 : i32, i32
  }
  func.func @transform_5(%arg0: i32) -> (i32, i32) {
    %c0_i32 = arith.constant 0 : i32
    %c0_i32_0 = arith.constant 0 : i32
    %c0_i32_1 = arith.constant 0 : i32
    return %c0_i32, %c0_i32_0 : i32, i32
  }
  func.func @transform_6(%arg0: i32) -> (i32, i32) {
    %c0_i32 = arith.constant 0 : i32
    %c0_i32_0 = arith.constant 0 : i32
    return %arg0, %c0_i32 : i32, i32
  }
}

</mosaic_0001>

<llo_original>
// kernel: tpu_custom_call.1
$region0: #{tpu_custom_call.1}
  #allocation0 [shape = 'u32[]', space=smem, size = 0x4, offset = 0x4, fixed_abs, tag = 'smem constant byte address 0x4 - core index']
  #allocation1 [shape = 'u32[72,128]{1,0:T(1,128)}', space=vmem, size = 0x9000, scoped, tag = 'internal scratch']
  %s0 = inlined_call_operand.hbm [shape: f32[8,32], index: 0, kind: input, shape index: {}]
  %s1 = inlined_call_operand.hbm [shape: f32[32,128], index: 1, kind: input, shape index: {}]
  %s2 = inlined_call_operand.hbm [shape: f32[128,512], index: 2, kind: input, shape index: {}]
  %s3 = inlined_call_operand.hbm [shape: f32[512,128], index: 3, kind: input, shape index: {}]
  %s4 = inlined_call_operand.hbm [shape: f32[1,256], index: 4, kind: input, shape index: {}]
  %s5 = inlined_call_operand.vmem [shape: f32[1,512], index: 5, kind: input, shape index: {}]
  %s6 = inlined_call_operand.hbm [shape: f32[8,8], index: 6, kind: output, shape index: {}]
  %s7 = sld [smem:[#allocation0]]
  $region54: #{tpu_custom_call.1} parent=0
    _
  %s9 = ssub.s32 1, %s7
  %s10 = scalar_select 0, %s9, %s7
  $region1: #{tpu_custom_call.1} parent=0
    #allocation2 [shape = 'u8[4096]{0}', space=vmem, size = 0x1000, scoped, tag = 'input window, operand 0, single buffered']
    #allocation3 [shape = 's32[1]{0}', space=sflag, size = 0x4, scoped, tag = 'scoped memory for tpu_custom_call.1']
    #allocation4 [shape = 's32[1]{0}', space=sflag, size = 0x4, scoped, tag = 'scoped memory for tpu_custom_call.1']
    #allocation5 [shape = 'u8[16384]{0}', space=vmem, size = 0x4000, scoped, tag = 'input window, operand 1, single buffered']
    #allocation6 [shape = 's32[1]{0}', space=sflag, size = 0x4, scoped, tag = 'scoped memory for tpu_custom_call.1']
    #allocation7 [shape = 'u8[262144]{0}', space=vmem, size = 0x40000, scoped, tag = 'input window, operand 2, single buffered']
    #allocation8 [shape = 'u8[262144]{0}', space=vmem, size = 0x40000, scoped, tag = 'input window, operand 3, single buffered']
    #allocation9 [shape = 's32[1]{0}', space=sflag, size = 0x4, scoped, tag = 'scoped memory for tpu_custom_call.1']
    #allocation10 [shape = 'u8[1024]{0}', space=vmem, size = 0x400, scoped, tag = 'input window, operand 4, single buffered']
    #allocation11 [shape = 'u8[4096]{0}', space=vmem, size = 0x1000, scoped, tag = 'output window, operand 0, single buffered']
    %11 = vsyncpa [#allocation3], 0
    %12 = vsyncpa [#allocation6], 0
    %13 = vsyncpa [#allocation9], 0
    %14 = vsyncpa [#allocation4], 0
    // Predicated region
    $region2: #{tpu_custom_call.1} parent=1 // pred_check
      _
    $region3: #{tpu_custom_call.1} parent=1 // pred_check_branch
      %16 = sbr.rel (0) target = $region5
    $region4: #{tpu_custom_call.1} parent=1 // pred_region
      %18 = vsyncadd [#allocation3], 0
      %s20 = sshll.u32 %s0, 4
      %s21 = int_to_ptr.hbm [resolvable:$true] %s20
      %s22 = sshll.u32 [#allocation2], 4
      %s23 = int_to_ptr.vmem [resolvable:$true] %s22
      %25 = dma.hbm_to_vmem [thread:$0]  %s21, 128, %s23, [#allocation3]
    $region5: #{tpu_custom_call.1} parent=1 // pred_fallthru
      _
    // Predicated region
    $region6: #{tpu_custom_call.1} parent=1 // pred_check
      _
    $region7: #{tpu_custom_call.1} parent=1 // pred_check_branch
      %27 = sbr.rel (0) target = $region9
    $region8: #{tpu_custom_call.1} parent=1 // pred_region
      %29 = vsyncadd [#allocation6], 0
      %s30 = sshll.u32 %s1, 4
      %s31 = int_to_ptr.hbm [resolvable:$true] %s30
      %s32 = sshll.u32 [#allocation5], 4
      %s33 = int_to_ptr.vmem [resolvable:$true] %s32
      %38 = dma.hbm_to_vmem [thread:$0]  %s31, 512, %s33, [#allocation6], 128, 128, 8
    $region9: #{tpu_custom_call.1} parent=1 // pred_fallthru
      _
    // Predicated region
    $region10: #{tpu_custom_call.1} parent=1 // pred_check
      _
    $region11: #{tpu_custom_call.1} parent=1 // pred_check_branch
      %40 = sbr.rel (0) target = $region13
    $region12: #{tpu_custom_call.1} parent=1 // pred_region
      %42 = vsyncadd [#allocation6], 0
      %s43 = sshll.u32 %s2, 4
      %s44 = int_to_ptr.hbm [resolvable:$true] %s43
      %s45 = sshll.u32 [#allocation7], 4
      %s46 = int_to_ptr.vmem [resolvable:$true] %s45
      %51 = dma.hbm_to_vmem [thread:$0]  %s44, 8192, %s46, [#allocation6], 512, 512, 32
    $region13: #{tpu_custom_call.1} parent=1 // pred_fallthru
      _
    // Predicated region
    $region14: #{tpu_custom_call.1} parent=1 // pred_check
      _
    $region15: #{tpu_custom_call.1} parent=1 // pred_check_branch
      %53 = sbr.rel (0) target = $region17
    $region16: #{tpu_custom_call.1} parent=1 // pred_region
      %55 = vsyncadd [#allocation9], 0
      %s56 = sshll.u32 %s3, 4
      %s57 = int_to_ptr.hbm [resolvable:$true] %s56
      %s58 = sshll.u32 [#allocation8], 4
      %s59 = int_to_ptr.vmem [resolvable:$true] %s58
      %64 = dma.hbm_to_vmem [thread:$0]  %s57, 8192, %s59, [#allocation9], 128, 128, 8
    $region17: #{tpu_custom_call.1} parent=1 // pred_fallthru
      _
    // Predicated region
    $region18: #{tpu_custom_call.1} parent=1 // pred_check
      _
    $region19: #{tpu_custom_call.1} parent=1 // pred_check_branch
      %66 = sbr.rel (0) target = $region21
    $region20: #{tpu_custom_call.1} parent=1 // pred_region
      %68 = vsyncadd [#allocation9], 0
      %s70 = sshll.u32 %s4, 4
      %s71 = int_to_ptr.hbm [resolvable:$true] %s70
      %s72 = sshll.u32 [#allocation10], 4
      %s73 = int_to_ptr.vmem [resolvable:$true] %s72
      %75 = dma.hbm_to_vmem [thread:$0]  %s71, 32, %s73, [#allocation9]
    $region21: #{tpu_custom_call.1} parent=1 // pred_fallthru
      _
    // Predicated region
    $region22: #{tpu_custom_call.1} parent=1 // pred_check
      _
    $region23: #{tpu_custom_call.1} parent=1 // pred_check_branch
      %77 = sbr.rel (0) target = $region25
    $region24: #{tpu_custom_call.1} parent=1 // pred_region
      _
    $region25: #{tpu_custom_call.1} parent=1 // pred_fallthru
      _
    // Predicated region
    $region26: #{tpu_custom_call.1} parent=1 // pred_check
      _
    $region27: #{tpu_custom_call.1} parent=1 // pred_check_branch
      %79 = sbr.rel (0) target = $region29
    $region28: #{tpu_custom_call.1} parent=1 // pred_region
      %81 = dma.done [#allocation3], 128
    $region29: #{tpu_custom_call.1} parent=1 // pred_fallthru
      _
    // Predicated region
    $region30: #{tpu_custom_call.1} parent=1 // pred_check
      _
    $region31: #{tpu_custom_call.1} parent=1 // pred_check_branch
      %83 = sbr.rel (0) target = $region33
    $region32: #{tpu_custom_call.1} parent=1 // pred_region
      %85 = dma.done [#allocation6], 512
    $region33: #{tpu_custom_call.1} parent=1 // pred_fallthru
      _
    // Predicated region
    $region34: #{tpu_custom_call.1} parent=1 // pred_check
      _
    $region35: #{tpu_custom_call.1} parent=1 // pred_check_branch
      %87 = sbr.rel (0) target = $region37
    $region36: #{tpu_custom_call.1} parent=1 // pred_region
      %89 = dma.done [#allocation6], 8192
    $region37: #{tpu_custom_call.1} parent=1 // pred_fallthru
      _
    // Predicated region
    $region38: #{tpu_custom_call.1} parent=1 // pred_check
      _
    $region39: #{tpu_custom_call.1} parent=1 // pred_check_branch
      %91 = sbr.rel (0) target = $region41
    $region40: #{tpu_custom_call.1} parent=1 // pred_region
      %93 = dma.done [#allocation9], 8192
    $region41: #{tpu_custom_call.1} parent=1 // pred_fallthru
      _
    // Predicated region
    $region42: #{tpu_custom_call.1} parent=1 // pred_check
      _
    $region43: #{tpu_custom_call.1} parent=1 // pred_check_branch
      %95 = sbr.rel (0) target = $region45
    $region44: #{tpu_custom_call.1} parent=1 // pred_region
      %97 = dma.done [#allocation9], 32
    $region45: #{tpu_custom_call.1} parent=1 // pred_fallthru
      _
    %v98 = vld [vmem:[#allocation2] sm:$0xff]
    %v99 = vld [vmem:[#allocation5] sm:$0xff]
    %v100 = vld [vmem:[#allocation5 + $0x8] sm:$0xff]
    %v101 = vld [vmem:[#allocation5 + $0x10] sm:$0xff]
    %v102 = vld [vmem:[#allocation5 + $0x18] sm:$0xff]
    %v103 = vld [vmem:[#allocation10] sm:$0x1]
    %v105 = vperm.slane %v103, 0
    %vm107 = vcmask 261120
    %v109 = vsel %vm107, %v98, 0
    %111 = vmatpush.msra.mxu0 0.0
    %112 = vmatpush.msra.mxu0 0.0
    %113 = vmatpush.msra.mxu0 0.0
    %114 = vmatpush.msra.mxu0 0.0
    %115 = vmatpush.msra.mxu0 0.0
    %116 = vmatpush.msra.mxu0 0.0
    %117 = vmatpush.msra.mxu0 0.0
    %118 = vmatpush.msra.mxu0 0.0
    %119 = vmatpush.msra.mxu0 0.0
    %120 = vmatpush.msra.mxu0 0.0
    %121 = vmatpush.msra.mxu0 0.0
    %122 = vmatpush.msra.mxu0 0.0
    %123 = vmatpush.msra.mxu0 %v102
    %124 = vmatpush.msra.mxu0 %v101
    %125 = vmatpush.msra.mxu0 %v100
    %126 = vmatpush.msra.mxu0 %v99
    %127 = vmatmul.f32.gmra.mxu0 %v109
    %v128 = vpop.f32.mrf.mxu0
    %v129 = vadd.f32 %v105, %v128
    %130 = vdwg.mxu0
    %v131 = vmax.f32 %v129, 0.0
    %v132 = vld [vmem:[#allocation7] sm:$0xff]
    %v133 = vld [vmem:[#allocation7 + $0x8] sm:$0xff]
    %v134 = vld [vmem:[#allocation7 + $0x10] sm:$0xff]
    %v135 = vld [vmem:[#allocation7 + $0x18] sm:$0xff]
    %v136 = vld [vmem:[#allocation7 + $0x20] sm:$0xff]
    %v137 = vld [vmem:[#allocation7 + $0x28] sm:$0xff]
    %v138 = vld [vmem:[#allocation7 + $0x30] sm:$0xff]
    %v139 = vld [vmem:[#allocation7 + $0x38] sm:$0xff]
    %v140 = vld [vmem:[#allocation7 + $0x40] sm:$0xff]
    %v141 = vld [vmem:[#allocation7 + $0x48] sm:$0xff]
    %v142 = vld [vmem:[#allocation7 + $0x50] sm:$0xff]
    %v143 = vld [vmem:[#allocation7 + $0x58] sm:$0xff]
    %v144 = vld [vmem:[#allocation7 + $0x60] sm:$0xff]
    %v145 = vld [vmem:[#allocation7 + $0x68] sm:$0xff]
    %v146 = vld [vmem:[#allocation7 + $0x70] sm:$0xff]
    %v147 = vld [vmem:[#allocation7 + $0x78] sm:$0xff]
    %v148 = vld [vmem:[#allocation7 + $0x80] sm:$0xff]
    %v149 = vld [vmem:[#allocation7 + $0x88] sm:$0xff]
    %v150 = vld [vmem:[#allocation7 + $0x90] sm:$0xff]
    %v151 = vld [vmem:[#allocation7 + $0x98] sm:$0xff]
    %v152 = vld [vmem:[#allocation7 + $0xa0] sm:$0xff]
    %v153 = vld [vmem:[#allocation7 + $0xa8] sm:$0xff]
    %v154 = vld [vmem:[#allocation7 + $0xb0] sm:$0xff]
    %v155 = vld [vmem:[#allocation7 + $0xb8] sm:$0xff]
    %v156 = vld [vmem:[#allocation7 + $0xc0] sm:$0xff]
    %v157 = vld [vmem:[#allocation7 + $0xc8] sm:$0xff]
    %v158 = vld [vmem:[#allocation7 + $0xd0] sm:$0xff]
    %v159 = vld [vmem:[#allocation7 + $0xd8] sm:$0xff]
    %v160 = vld [vmem:[#allocation7 + $0xe0] sm:$0xff]
    %v161 = vld [vmem:[#allocation7 + $0xe8] sm:$0xff]
    %v162 = vld [vmem:[#allocation7 + $0xf0] sm:$0xff]
    %v163 = vld [vmem:[#allocation7 + $0xf8] sm:$0xff]
    %v164 = vld [vmem:[#allocation7 + $0x100] sm:$0xff]
    %v165 = vld [vmem:[#allocation7 + $0x108] sm:$0xff]
    %v166 = vld [vmem:[#allocation7 + $0x110] sm:$0xff]
    %v167 = vld [vmem:[#allocation7 + $0x118] sm:$0xff]
    %v168 = vld [vmem:[#allocation7 + $0x120] sm:$0xff]
    %v169 = vld [vmem:[#allocation7 + $0x128] sm:$0xff]
    %v170 = vld [vmem:[#allocation7 + $0x130] sm:$0xff]
    %v171 = vld [vmem:[#allocation7 + $0x138] sm:$0xff]
    %v172 = vld [vmem:[#allocation7 + $0x140] sm:$0xff]
    %v173 = vld [vmem:[#allocation7 + $0x148] sm:$0xff]
    %v174 = vld [vmem:[#allocation7 + $0x150] sm:$0xff]
    %v175 = vld [vmem:[#allocation7 + $0x158] sm:$0xff]
    %v176 = vld [vmem:[#allocation7 + $0x160] sm:$0xff]
    %v177 = vld [vmem:[#allocation7 + $0x168] sm:$0xff]
    %v178 = vld [vmem:[#allocation7 + $0x170] sm:$0xff]
    %v179 = vld [vmem:[#allocation7 + $0x178] sm:$0xff]
    %v180 = vld [vmem:[#allocation7 + $0x180] sm:$0xff]
    %v181 = vld [vmem:[#allocation7 + $0x188] sm:$0xff]
    %v182 = vld [vmem:[#allocation7 + $0x190] sm:$0xff]
    %v183 = vld [vmem:[#allocation7 + $0x198] sm:$0xff]
    %v184 = vld [vmem:[#allocation7 + $0x1a0] sm:$0xff]
    %v185 = vld [vmem:[#allocation7 + $0x1a8] sm:$0xff]
    %v186 = vld [vmem:[#allocation7 + $0x1b0] sm:$0xff]
    %v187 = vld [vmem:[#allocation7 + $0x1b8] sm:$0xff]
    %v188 = vld [vmem:[#allocation7 + $0x1c0] sm:$0xff]
    %v189 = vld [vmem:[#allocation7 + $0x1c8] sm:$0xff]
    %v190 = vld [vmem:[#allocation7 + $0x1d0] sm:$0xff]
    %v191 = vld [vmem:[#allocation7 + $0x1d8] sm:$0xff]
    %v192 = vld [vmem:[#allocation7 + $0x1e0] sm:$0xff]
    %v193 = vld [vmem:[#allocation7 + $0x1e8] sm:$0xff]
    %v194 = vld [vmem:[#allocation7 + $0x1f0] sm:$0xff]
    %v195 = vld [vmem:[#allocation7 + $0x1f8] sm:$0xff]
    %v196 = vld [vmem:[%s5] sm:$0xf]
    %v198 = vperm.slane %v196, 0
    %v199 = vperm.slane %v196, 1
    %v200 = vperm.slane %v196, 2
    %v201 = vperm.slane %v196, 3
    %206 = vmatpush.msra.mxu0 %v192
    %207 = vmatpush.msra.mxu0 %v188
    %208 = vmatpush.msra.mxu0 %v184
    %209 = vmatpush.msra.mxu0 %v180
    %210 = vmatpush.msra.mxu0 %v176
    %211 = vmatpush.msra.mxu0 %v172
    %212 = vmatpush.msra.mxu0 %v168
    %213 = vmatpush.msra.mxu0 %v164
    %214 = vmatpush.msra.mxu0 %v160
    %215 = vmatpush.msra.mxu0 %v156
    %216 = vmatpush.msra.mxu0 %v152
    %217 = vmatpush.msra.mxu0 %v148
    %218 = vmatpush.msra.mxu0 %v144
    %219 = vmatpush.msra.mxu0 %v140
    %220 = vmatpush.msra.mxu0 %v136
    %221 = vmatpush.msra.mxu0 %v132
    %222 = vmatmul.f32.gmra.mxu0 %v131
    %v223 = vpop.f32.mrf.mxu0
    %v224 = vadd.f32 %v198, %v223
    %225 = vdwg.mxu0
    %226 = vmatpush.msra.mxu0 %v193
    %227 = vmatpush.msra.mxu0 %v189
    %228 = vmatpush.msra.mxu0 %v185
    %229 = vmatpush.msra.mxu0 %v181
    %230 = vmatpush.msra.mxu0 %v177
    %231 = vmatpush.msra.mxu0 %v173
    %232 = vmatpush.msra.mxu0 %v169
    %233 = vmatpush.msra.mxu0 %v165
    %234 = vmatpush.msra.mxu0 %v161
    %235 = vmatpush.msra.mxu0 %v157
    %236 = vmatpush.msra.mxu0 %v153
    %237 = vmatpush.msra.mxu0 %v149
    %238 = vmatpush.msra.mxu0 %v145
    %239 = vmatpush.msra.mxu0 %v141
    %240 = vmatpush.msra.mxu0 %v137
    %241 = vmatpush.msra.mxu0 %v133
    %242 = vmatmul.f32.gmra.mxu0 %v131
    %v243 = vpop.f32.mrf.mxu0
    %v244 = vadd.f32 %v199, %v243
    %245 = vdwg.mxu0
    %246 = vmatpush.msra.mxu0 %v194
    %247 = vmatpush.msra.mxu0 %v190
    %248 = vmatpush.msra.mxu0 %v186
    %249 = vmatpush.msra.mxu0 %v182
    %250 = vmatpush.msra.mxu0 %v178
    %251 = vmatpush.msra.mxu0 %v174
    %252 = vmatpush.msra.mxu0 %v170
    %253 = vmatpush.msra.mxu0 %v166
    %254 = vmatpush.msra.mxu0 %v162
    %255 = vmatpush.msra.mxu0 %v158
    %256 = vmatpush.msra.mxu0 %v154
    %257 = vmatpush.msra.mxu0 %v150
    %258 = vmatpush.msra.mxu0 %v146
    %259 = vmatpush.msra.mxu0 %v142
    %260 = vmatpush.msra.mxu0 %v138
    %261 = vmatpush.msra.mxu0 %v134
    %262 = vmatmul.f32.gmra.mxu0 %v131
    %v263 = vpop.f32.mrf.mxu0
    %v264 = vadd.f32 %v200, %v263
    %265 = vdwg.mxu0
    %266 = vmatpush.msra.mxu0 %v195
    %267 = vmatpush.msra.mxu0 %v191
    %268 = vmatpush.msra.mxu0 %v187
    %269 = vmatpush.msra.mxu0 %v183
    %270 = vmatpush.msra.mxu0 %v179
    %271 = vmatpush.msra.mxu0 %v175
    %272 = vmatpush.msra.mxu0 %v171
    %273 = vmatpush.msra.mxu0 %v167
    %274 = vmatpush.msra.mxu0 %v163
    %275 = vmatpush.msra.mxu0 %v159
    %276 = vmatpush.msra.mxu0 %v155
    %277 = vmatpush.msra.mxu0 %v151
    %278 = vmatpush.msra.mxu0 %v147
    %279 = vmatpush.msra.mxu0 %v143
    %280 = vmatpush.msra.mxu0 %v139
    %281 = vmatpush.msra.mxu0 %v135
    %282 = vmatmul.f32.gmra.mxu0 %v131
    %v283 = vpop.f32.mrf.mxu0
    %v284 = vadd.f32 %v201, %v283
    %285 = vdwg.mxu0
    %v286 = vmax.f32 %v224, 0.0
    %v287 = vmax.f32 %v244, 0.0
    %v288 = vmax.f32 %v264, 0.0
    %v289 = vmax.f32 %v284, 0.0
    %v290 = vld [vmem:[#allocation8] sm:$0xff]
    %v291 = vld [vmem:[#allocation8 + $0x8] sm:$0xff]
    %v292 = vld [vmem:[#allocation8 + $0x10] sm:$0xff]
    %v293 = vld [vmem:[#allocation8 + $0x18] sm:$0xff]
    %v294 = vld [vmem:[#allocation8 + $0x20] sm:$0xff]
    %v295 = vld [vmem:[#allocation8 + $0x28] sm:$0xff]
    %v296 = vld [vmem:[#allocation8 + $0x30] sm:$0xff]
    %v297 = vld [vmem:[#allocation8 + $0x38] sm:$0xff]
    %v298 = vld [vmem:[#allocation8 + $0x40] sm:$0xff]
    %v299 = vld [vmem:[#allocation8 + $0x48] sm:$0xff]
    %v300 = vld [vmem:[#allocation8 + $0x50] sm:$0xff]
    %v301 = vld [vmem:[#allocation8 + $0x58] sm:$0xff]
    %v302 = vld [vmem:[#allocation8 + $0x60] sm:$0xff]
    %v303 = vld [vmem:[#allocation8 + $0x68] sm:$0xff]
    %v304 = vld [vmem:[#allocation8 + $0x70] sm:$0xff]
    %v305 = vld [vmem:[#allocation8 + $0x78] sm:$0xff]
    %v306 = vld [vmem:[#allocation8 + $0x80] sm:$0xff]
    %v307 = vld [vmem:[#allocation8 + $0x88] sm:$0xff]
    %v308 = vld [vmem:[#allocation8 + $0x90] sm:$0xff]
    %v309 = vld [vmem:[#allocation8 + $0x98] sm:$0xff]
    %v310 = vld [vmem:[#allocation8 + $0xa0] sm:$0xff]
    %v311 = vld [vmem:[#allocation8 + $0xa8] sm:$0xff]
    %v312 = vld [vmem:[#allocation8 + $0xb0] sm:$0xff]
    %v313 = vld [vmem:[#allocation8 + $0xb8] sm:$0xff]
    %v314 = vld [vmem:[#allocation8 + $0xc0] sm:$0xff]
    %v315 = vld [vmem:[#allocation8 + $0xc8] sm:$0xff]
    %v316 = vld [vmem:[#allocation8 + $0xd0] sm:$0xff]
    %v317 = vld [vmem:[#allocation8 + $0xd8] sm:$0xff]
    %v318 = vld [vmem:[#allocation8 + $0xe0] sm:$0xff]
    %v319 = vld [vmem:[#allocation8 + $0xe8] sm:$0xff]
    %v320 = vld [vmem:[#allocation8 + $0xf0] sm:$0xff]
    %v321 = vld [vmem:[#allocation8 + $0xf8] sm:$0xff]
    %v322 = vld [vmem:[#allocation8 + $0x100] sm:$0xff]
    %v323 = vld [vmem:[#allocation8 + $0x108] sm:$0xff]
    %v324 = vld [vmem:[#allocation8 + $0x110] sm:$0xff]
    %v325 = vld [vmem:[#allocation8 + $0x118] sm:$0xff]
    %v326 = vld [vmem:[#allocation8 + $0x120] sm:$0xff]
    %v327 = vld [vmem:[#allocation8 + $0x128] sm:$0xff]
    %v328 = vld [vmem:[#allocation8 + $0x130] sm:$0xff]
    %v329 = vld [vmem:[#allocation8 + $0x138] sm:$0xff]
    %v330 = vld [vmem:[#allocation8 + $0x140] sm:$0xff]
    %v331 = vld [vmem:[#allocation8 + $0x148] sm:$0xff]
    %v332 = vld [vmem:[#allocation8 + $0x150] sm:$0xff]
    %v333 = vld [vmem:[#allocation8 + $0x158] sm:$0xff]
    %v334 = vld [vmem:[#allocation8 + $0x160] sm:$0xff]
    %v335 = vld [vmem:[#allocation8 + $0x168] sm:$0xff]
    %v336 = vld [vmem:[#allocation8 + $0x170] sm:$0xff]
    %v337 = vld [vmem:[#allocation8 + $0x178] sm:$0xff]
    %v338 = vld [vmem:[#allocation8 + $0x180] sm:$0xff]
    %v339 = vld [vmem:[#allocation8 + $0x188] sm:$0xff]
    %v340 = vld [vmem:[#allocation8 + $0x190] sm:$0xff]
    %v341 = vld [vmem:[#allocation8 + $0x198] sm:$0xff]
    %v342 = vld [vmem:[#allocation8 + $0x1a0] sm:$0xff]
    %v343 = vld [vmem:[#allocation8 + $0x1a8] sm:$0xff]
    %v344 = vld [vmem:[#allocation8 + $0x1b0] sm:$0xff]
    %v345 = vld [vmem:[#allocation8 + $0x1b8] sm:$0xff]
    %v346 = vld [vmem:[#allocation8 + $0x1c0] sm:$0xff]
    %v347 = vld [vmem:[#allocation8 + $0x1c8] sm:$0xff]
    %v348 = vld [vmem:[#allocation8 + $0x1d0] sm:$0xff]
    %v349 = vld [vmem:[#allocation8 + $0x1d8] sm:$0xff]
    %v350 = vld [vmem:[#allocation8 + $0x1e0] sm:$0xff]
    %v351 = vld [vmem:[#allocation8 + $0x1e8] sm:$0xff]
    %v352 = vld [vmem:[#allocation8 + $0x1f0] sm:$0xff]
    %v353 = vld [vmem:[#allocation8 + $0x1f8] sm:$0xff]
    %v354 = vld [vmem:[#allocation10 + $0x1] sm:$0x1]
    %v356 = vperm.slane %v354, 0
    %358 = vmatpush.msra.mxu0 %v305
    %359 = vmatpush.msra.mxu0 %v304
    %360 = vmatpush.msra.mxu0 %v303
    %361 = vmatpush.msra.mxu0 %v302
    %362 = vmatpush.msra.mxu0 %v301
    %363 = vmatpush.msra.mxu0 %v300
    %364 = vmatpush.msra.mxu0 %v299
    %365 = vmatpush.msra.mxu0 %v298
    %366 = vmatpush.msra.mxu0 %v297
    %367 = vmatpush.msra.mxu0 %v296
    %368 = vmatpush.msra.mxu0 %v295
    %369 = vmatpush.msra.mxu0 %v294
    %370 = vmatpush.msra.mxu0 %v293
    %371 = vmatpush.msra.mxu0 %v292
    %372 = vmatpush.msra.mxu0 %v291
    %373 = vmatpush.msra.mxu0 %v290
    %374 = vmatmul.f32.gmra.mxu0 %v286
    %v375 = vpop.f32.mrf.mxu0
    %v376 = vadd.f32 %v356, %v375
    %377 = vdwg.mxu0
    %378 = vmatpush.msra.mxu0 %v321
    %379 = vmatpush.msra.mxu0 %v320
    %380 = vmatpush.msra.mxu0 %v319
    %381 = vmatpush.msra.mxu0 %v318
    %382 = vmatpush.msra.mxu0 %v317
    %383 = vmatpush.msra.mxu0 %v316
    %384 = vmatpush.msra.mxu0 %v315
    %385 = vmatpush.msra.mxu0 %v314
    %386 = vmatpush.msra.mxu0 %v313
    %387 = vmatpush.msra.mxu0 %v312
    %388 = vmatpush.msra.mxu0 %v311
    %389 = vmatpush.msra.mxu0 %v310
    %390 = vmatpush.msra.mxu0 %v309
    %391 = vmatpush.msra.mxu0 %v308
    %392 = vmatpush.msra.mxu0 %v307
    %393 = vmatpush.msra.mxu0 %v306
    %394 = vmatmul.f32.gmra.mxu0 %v287
    %v395 = vpop.f32.mrf.mxu0
    %v396 = vadd.f32 %v376, %v395
    %397 = vdwg.mxu0
    %398 = vmatpush.msra.mxu0 %v337
    %399 = vmatpush.msra.mxu0 %v336
    %400 = vmatpush.msra.mxu0 %v335
    %401 = vmatpush.msra.mxu0 %v334
    %402 = vmatpush.msra.mxu0 %v333
    %403 = vmatpush.msra.mxu0 %v332
    %404 = vmatpush.msra.mxu0 %v331
    %405 = vmatpush.msra.mxu0 %v330
    %406 = vmatpush.msra.mxu0 %v329
    %407 = vmatpush.msra.mxu0 %v328
    %408 = vmatpush.msra.mxu0 %v327
    %409 = vmatpush.msra.mxu0 %v326
    %410 = vmatpush.msra.mxu0 %v325
    %411 = vmatpush.msra.mxu0 %v324
    %412 = vmatpush.msra.mxu0 %v323
    %413 = vmatpush.msra.mxu0 %v322
    %414 = vmatmul.f32.gmra.mxu0 %v288
    %v415 = vpop.f32.mrf.mxu0
    %v416 = vadd.f32 %v396, %v415
    %417 = vdwg.mxu0
    %418 = vmatpush.msra.mxu0 %v353
    %419 = vmatpush.msra.mxu0 %v352
    %420 = vmatpush.msra.mxu0 %v351
    %421 = vmatpush.msra.mxu0 %v350
    %422 = vmatpush.msra.mxu0 %v349
    %423 = vmatpush.msra.mxu0 %v348
    %424 = vmatpush.msra.mxu0 %v347
    %425 = vmatpush.msra.mxu0 %v346
    %426 = vmatpush.msra.mxu0 %v345
    %427 = vmatpush.msra.mxu0 %v344
    %428 = vmatpush.msra.mxu0 %v343
    %429 = vmatpush.msra.mxu0 %v342
    %430 = vmatpush.msra.mxu0 %v341
    %431 = vmatpush.msra.mxu0 %v340
    %432 = vmatpush.msra.mxu0 %v339
    %433 = vmatpush.msra.mxu0 %v338
    %434 = vmatmul.f32.gmra.mxu0 %v289
    %v435 = vpop.f32.mrf.mxu0
    %v436 = vadd.f32 %v416, %v435
    %437 = vdwg.mxu0
    %vm438 = vcmask 64512
    %439 = vst.msk [vmem:[#allocation11] sm:$0xff] %vm438, %v436
    // Predicated region
    $region46: #{tpu_custom_call.1} parent=1 // pred_check
      _
    $region47: #{tpu_custom_call.1} parent=1 // pred_check_branch
      %441 = sbr.rel (0) target = $region49
    $region48: #{tpu_custom_call.1} parent=1 // pred_region
      %443 = vsyncadd [#allocation4], 0
      %s445 = sshll.u32 [#allocation11], 4
      %s446 = int_to_ptr.vmem [resolvable:$true] %s445
      %s447 = sshll.u32 %s6, 4
      %s448 = int_to_ptr.hbm [resolvable:$true] %s447
      %450 = dma.vmem_to_hbm [thread:$0]  %s446, 128, %s448, [#allocation4]
    $region49: #{tpu_custom_call.1} parent=1 // pred_fallthru
      _
    // Predicated region
    $region50: #{tpu_custom_call.1} parent=1 // pred_check
      _
    $region51: #{tpu_custom_call.1} parent=1 // pred_check_branch
      %452 = sbr.rel (0) target = $region53
    $region52: #{tpu_custom_call.1} parent=1 // pred_region
      %454 = dma.done [#allocation4], 128
    $region53: #{tpu_custom_call.1} parent=1 // pred_fallthru
      _
    %455 = vsyncpa [#allocation3], 1
    %456 = vsyncpa [#allocation6], 1
    %457 = vsyncpa [#allocation9], 1
    %458 = vsyncpa [#allocation4], 1

</llo_original>
